<compile_context>
chip_gen: v7x
topology: tpu7x:2x2x1
jax: 0.10.0
libtpu: 0.0.40
codegen_flags: <defaults>
</compile_context>

<pallas_src>
import jax
import jax.numpy as jnp
from jax.experimental import pallas as pl
from jax.experimental.pallas import tpu as pltpu

HIDDEN = 256
LANE = 128            # TPU lane width; layer-3 out-features padded to this *in VMEM only*
MAX_TILE_B = 2048     # large tiles amortize the ~0.35 us per-grid-step overhead
MIN_TILE_B = 16       # bf16 sublane packing (16, 128)


def _round_up(x, m):
    return ((x + m - 1) // m) * m


def _actor_kernel(scale_ref, x_ref, w1_ref, b1_ref, w2_ref, b2_ref,
                  w3_ref, b3_ref, o_ref):
    # State: use bf16 directly if the caller supplied it; otherwise cast in-kernel
    # (free under MXU/DMA slack — do NOT cast in the wrapper).
    x = x_ref[...]
    if x.dtype != jnp.bfloat16:
        x = x.astype(jnp.bfloat16)

    # Layer 1: Linear(state_dim, 256) + ReLU.  bf16 MXU matmul, f32 accumulate.
    h1 = jnp.dot(x, w1_ref[...], preferred_element_type=jnp.float32)
    h1 = jnp.maximum(h1 + b1_ref[...], 0.0)

    # Layer 2: Linear(256, 256) + ReLU  (carries ~94% of the FLOPs).
    h2 = jnp.dot(h1.astype(jnp.bfloat16), w2_ref[...],
                 preferred_element_type=jnp.float32)
    h2 = jnp.maximum(h2 + b2_ref[...], 0.0)

    # Layer 3: Linear(256, a_pad) with lane-padded weights, then max_action * tanh.
    h3 = jnp.dot(h2.astype(jnp.bfloat16), w3_ref[...],
                 preferred_element_type=jnp.float32)
    h3 = scale_ref[0] * jnp.tanh(h3 + b3_ref[...])

    # Store only the real action columns; the 128-lane padding never reaches HBM.
    action_dim = o_ref.shape[-1]
    o_ref[...] = h3[:, :action_dim].astype(o_ref.dtype)


def prepare_actor_params(params):
    """One-time parameter prep (hoisted out of the per-call wrapper):
    bf16 weights for the MXU, f32 biases for the VPU, lane-pad layer 3 to 128."""
    w3, b3 = params["w3"], params["b3"]
    action_dim = w3.shape[1]
    a_pad = _round_up(max(action_dim, LANE), LANE)
    b3 = jnp.asarray(b3, dtype=jnp.float32).reshape(1, -1)
    if a_pad != action_dim:
        # zero-pad: padded lanes stay exactly 0 through tanh and are never stored
        w3 = jnp.pad(w3, ((0, 0), (0, a_pad - action_dim)))
        b3 = jnp.pad(b3, ((0, 0), (0, a_pad - action_dim)))
    return {
        "w1": params["w1"].astype(jnp.bfloat16),
        "w2": params["w2"].astype(jnp.bfloat16),
        "w3": w3.astype(jnp.bfloat16),
        "b1": jnp.asarray(params["b1"], dtype=jnp.float32).reshape(1, -1),
        "b2": jnp.asarray(params["b2"], dtype=jnp.float32).reshape(1, -1),
        "b3": b3,
        "action_dim": action_dim,
    }


def mlp_deterministic_actor(state, prepared, max_action):
    """state: (B, state_dim) f32 or bf16. prepared: output of prepare_actor_params."""
    w1, w2, w3 = prepared["w1"], prepared["w2"], prepared["w3"]
    b1, b2, b3 = prepared["b1"], prepared["b2"], prepared["b3"]
    action_dim = prepared["action_dim"]

    B, state_dim = state.shape
    H = w1.shape[1]
    a_pad = w3.shape[1]
    out_dtype = state.dtype

    # --- batch tiling --------------------------------------------------------
    b16 = _round_up(B, MIN_TILE_B)
    tile_b = min(MAX_TILE_B, b16)
    # v7x: if there is more than one minimal tile of work, target >= 2 grid steps
    # so the "parallel" batch axis shards across both TensorCores.
    if b16 > MIN_TILE_B:
        tile_b = min(tile_b, _round_up(-(-b16 // 2), MIN_TILE_B))
    tile_b = max(tile_b, MIN_TILE_B)
    # Cap padding waste: if rounding B up to a full tile wastes > 25%, halve tile_b.
    while True:
        b_pad = _round_up(b16, tile_b)
        if tile_b <= MIN_TILE_B or (b_pad - B) * 4 <= b_pad:
            break
        tile_b = max(MIN_TILE_B, _round_up(tile_b // 2, MIN_TILE_B))
    b_pad = _round_up(b16, tile_b)
    grid = (b_pad // tile_b,)

    if b_pad != B:
        state = jnp.pad(state, ((0, b_pad - B), (0, 0)))

    scale = jnp.asarray([max_action], dtype=jnp.float32)  # SMEM scalar, no recompile

    resident = lambda i: (0, 0)  # weights/biases: same block every grid step
    in_specs = [
        pl.BlockSpec(memory_space=pltpu.MemorySpace.SMEM),            # max_action
        pl.BlockSpec((tile_b, state_dim), lambda i: (i, 0)),          # state tile
        pl.BlockSpec((state_dim, H), resident),                       # w1
        pl.BlockSpec((1, H), resident),                               # b1
        pl.BlockSpec((H, H), resident),                               # w2
        pl.BlockSpec((1, H), resident),                               # b2
        pl.BlockSpec((H, a_pad), resident),                           # w3 (lane-padded)
        pl.BlockSpec((1, a_pad), resident),                           # b3 (lane-padded)
    ]
    # Output block covers the full (unpadded) action_dim -> contiguous HBM writes,
    # no padded columns ever hit HBM.
    out_specs = pl.BlockSpec((tile_b, action_dim), lambda i: (i, 0))

    flops = 2 * b_pad * (state_dim * H + H * H + H * a_pad)
    bytes_accessed = (
        b_pad * state_dim * state.dtype.itemsize
        + w1.size * 2 + w2.size * 2 + w3.size * 2
        + b1.size * 4 + b2.size * 4 + b3.size * 4
        + b_pad * action_dim * jnp.dtype(out_dtype).itemsize
    )
    cost = pl.CostEstimate(flops=flops,
                           transcendentals=b_pad * a_pad,
                           bytes_accessed=bytes_accessed)

    out = pl.pallas_call(
        _actor_kernel,
        out_shape=jax.ShapeDtypeStruct((b_pad, action_dim), out_dtype),
        grid=grid,
        in_specs=in_specs,
        out_specs=out_specs,
        compiler_params=pltpu.CompilerParams(
            dimension_semantics=("parallel",)),
        cost_estimate=cost,
    )(scale, state, w1, b1, w2, b2, w3, b3)

    return out if b_pad == B else out[:B]


def init_params(key, state_dim, action_dim, hidden=HIDDEN, dtype=jnp.float32):
    """Deterministic synthetic init (PyTorch-Linear-style uniform bounds)."""
    ks = jax.random.split(key, 6)

    def uniform(k, shape, fan_in):
        bound = 1.0 / jnp.sqrt(fan_in)
        return jax.random.uniform(k, shape, dtype=dtype, minval=-bound, maxval=bound)

    return {
        "w1": uniform(ks[0], (state_dim, hidden), state_dim),
        "b1": uniform(ks[1], (1, hidden), state_dim),
        "w2": uniform(ks[2], (hidden, hidden), hidden),
        "b2": uniform(ks[3], (1, hidden), hidden),
        "w3": uniform(ks[4], (hidden, action_dim), hidden),
        "b3": uniform(ks[5], (1, action_dim), hidden),
    }


def reference_forward_matched(state, params, max_action):
    """Same numerics as the kernel: bf16 matmul operands, f32 accumulate/elementwise."""
    w1 = params["w1"].astype(jnp.bfloat16)
    w2 = params["w2"].astype(jnp.bfloat16)
    w3 = params["w3"].astype(jnp.bfloat16)
    h1 = jnp.dot(state.astype(jnp.bfloat16), w1,
                 preferred_element_type=jnp.float32) + params["b1"]
    h1 = jnp.maximum(h1, 0.0)
    h2 = jnp.dot(h1.astype(jnp.bfloat16), w2,
                 preferred_element_type=jnp.float32) + params["b2"]
    h2 = jnp.maximum(h2, 0.0)
    h3 = jnp.dot(h2.astype(jnp.bfloat16), w3,
                 preferred_element_type=jnp.float32) + params["b3"]
    return max_action * jnp.tanh(h3)


def reference_forward_f32(state, params, max_action):
    h1 = jnp.maximum(state @ params["w1"] + params["b1"], 0.0)
    h2 = jnp.maximum(h1 @ params["w2"] + params["b2"], 0.0)
    return max_action * jnp.tanh(h2 @ params["w3"] + params["b3"])


if __name__ == "__main__":
    key = jax.random.PRNGKey(0)
    k_params, k_state = jax.random.split(key)

    state_dim, action_dim, max_action = 16, 8, 2.0

    params = init_params(k_params, state_dim, action_dim)
    prepared = prepare_actor_params(params)   # one-time cast/pad, hoisted out of forward

    # --- small batch (single-tile grid) ---
    batch = 8
    state = jax.random.normal(k_state, (batch, state_dim), dtype=jnp.float32)
    out = jax.block_until_ready(mlp_deterministic_actor(state, prepared, max_action))
    assert out.shape == (batch, action_dim)

    ref_bf16 = reference_forward_matched(state, params, max_action)
    assert jnp.allclose(out, ref_bf16, atol=2e-3, rtol=2e-3), \
        "mismatch vs bf16-matched reference"
    ref_f32 = reference_forward_f32(state, params, max_action)
    assert jnp.allclose(out, ref_f32, atol=5e-2, rtol=5e-2), \
        "mismatch vs f32 reference (beyond bf16 tolerance)"

    # --- multi-tile batch (exercises grid>1, padding-waste cap, v7x >=2-step path) ---
    batch2 = 40
    state2 = jax.random.normal(jax.random.PRNGKey(1), (batch2, state_dim),
                               dtype=jnp.float32)
    out2 = jax.block_until_ready(mlp_deterministic_actor(state2, prepared, max_action))
    assert out2.shape == (batch2, action_dim)
    ref2 = reference_forward_matched(state2, params, max_action)
    assert jnp.allclose(out2, ref2, atol=2e-3, rtol=2e-3), \
        "multi-tile mismatch vs bf16-matched reference"

    # --- bf16 state path (caller-provided bf16 halves the input DMA) ---
    out3 = jax.block_until_ready(
        mlp_deterministic_actor(state.astype(jnp.bfloat16), prepared, max_action))
    assert out3.shape == (batch, action_dim)
    assert jnp.allclose(out3.astype(jnp.float32), ref_bf16, atol=5e-2, rtol=5e-2), \
        "bf16-state mismatch vs bf16-matched reference"

    print("KERNEL_OK")
</pallas_src>

<mosaic_0001>
module attributes {stable_mosaic.version = 11 : i64} {
  func.func @_actor_kernel(%arg0: i32, %arg1: memref<1xf32, #tpu.memory_space<smem>>, %arg2: memref<16x16xf32, #tpu.memory_space<vmem>>, %arg3: memref<16x256xbf16, #tpu.memory_space<vmem>>, %arg4: memref<1x256xf32, #tpu.memory_space<vmem>>, %arg5: memref<256x256xbf16, #tpu.memory_space<vmem>>, %arg6: memref<1x256xf32, #tpu.memory_space<vmem>>, %arg7: memref<256x128xbf16, #tpu.memory_space<vmem>>, %arg8: memref<1x128xf32, #tpu.memory_space<vmem>>, %arg9: memref<16x8xf32, #tpu.memory_space<vmem>>) attributes {dimension_semantics = [#tpu.dimension_semantics<parallel>], iteration_bounds = array<i64: 1>, scalar_prefetch = 0 : i64, scratch_operands = 0 : i64, tpu.core_type = #tpu.core_type<tc>, window_params = [{transform_indices = @transform_0, window_bounds = array<i64: 1>}, {transform_indices = @transform_1, window_bounds = array<i64: 16, 16>}, {pipeline_mode = #tpu.pipeline_mode<synchronous>, transform_indices = @transform_2, window_bounds = array<i64: 16, 256>}, {pipeline_mode = #tpu.pipeline_mode<synchronous>, transform_indices = @transform_3, window_bounds = array<i64: 1, 256>}, {pipeline_mode = #tpu.pipeline_mode<synchronous>, transform_indices = @transform_4, window_bounds = array<i64: 256, 256>}, {pipeline_mode = #tpu.pipeline_mode<synchronous>, transform_indices = @transform_5, window_bounds = array<i64: 1, 256>}, {pipeline_mode = #tpu.pipeline_mode<synchronous>, transform_indices = @transform_6, window_bounds = array<i64: 256, 128>}, {pipeline_mode = #tpu.pipeline_mode<synchronous>, transform_indices = @transform_7, window_bounds = array<i64: 1, 128>}, {transform_indices = @transform_8, window_bounds = array<i64: 16, 8>}]} {
    %c0 = arith.constant 0 : index
    %c0_0 = arith.constant 0 : index
    %0 = vector.load %arg2[%c0, %c0_0] : memref<16x16xf32, #tpu.memory_space<vmem>>, vector<16x16xf32>
    %1 = arith.truncf %0 : vector<16x16xf32> to vector<16x16xbf16>
    %c0_1 = arith.constant 0 : index
    %c0_2 = arith.constant 0 : index
    %2 = vector.load %arg3[%c0_1, %c0_2] : memref<16x256xbf16, #tpu.memory_space<vmem>>, vector<16x256xbf16>
    %cst = arith.constant dense<0.000000e+00> : vector<16x256xf32>
    %3 = tpu.matmul %1, %2, %cst {dimension_numbers = #tpu.dot_dimension_numbers<[1], [0], [0], [1], [0, 0, 1, 1], [], []>} : vector<16x16xbf16>, vector<16x256xbf16>, vector<16x256xf32> -> vector<16x256xf32>
    %c0_3 = arith.constant 0 : index
    %c0_4 = arith.constant 0 : index
    %4 = vector.load %arg4[%c0_3, %c0_4] : memref<1x256xf32, #tpu.memory_space<vmem>>, vector<1x256xf32>
    %5 = vector.broadcast %4 : vector<1x256xf32> to vector<16x256xf32>
    %6 = arith.addf %3, %5 : vector<16x256xf32>
    %cst_5 = arith.constant 0.000000e+00 : f32
    %7 = vector.broadcast %cst_5 : f32 to vector<16x256xf32>
    %8 = arith.maximumf %6, %7 : vector<16x256xf32>
    %9 = arith.truncf %8 : vector<16x256xf32> to vector<16x256xbf16>
    %c0_6 = arith.constant 0 : index
    %c0_7 = arith.constant 0 : index
    %10 = vector.load %arg5[%c0_6, %c0_7] : memref<256x256xbf16, #tpu.memory_space<vmem>>, vector<256x256xbf16>
    %cst_8 = arith.constant dense<0.000000e+00> : vector<16x256xf32>
    %11 = tpu.matmul %9, %10, %cst_8 {dimension_numbers = #tpu.dot_dimension_numbers<[1], [0], [0], [1], [0, 0, 1, 1], [], []>} : vector<16x256xbf16>, vector<256x256xbf16>, vector<16x256xf32> -> vector<16x256xf32>
    %c0_9 = arith.constant 0 : index
    %c0_10 = arith.constant 0 : index
    %12 = vector.load %arg6[%c0_9, %c0_10] : memref<1x256xf32, #tpu.memory_space<vmem>>, vector<1x256xf32>
    %13 = vector.broadcast %12 : vector<1x256xf32> to vector<16x256xf32>
    %14 = arith.addf %11, %13 : vector<16x256xf32>
    %cst_11 = arith.constant 0.000000e+00 : f32
    %15 = vector.broadcast %cst_11 : f32 to vector<16x256xf32>
    %16 = arith.maximumf %14, %15 : vector<16x256xf32>
    %17 = arith.truncf %16 : vector<16x256xf32> to vector<16x256xbf16>
    %c0_12 = arith.constant 0 : index
    %c0_13 = arith.constant 0 : index
    %18 = vector.load %arg7[%c0_12, %c0_13] : memref<256x128xbf16, #tpu.memory_space<vmem>>, vector<256x128xbf16>
    %cst_14 = arith.constant dense<0.000000e+00> : vector<16x128xf32>
    %19 = tpu.matmul %17, %18, %cst_14 {dimension_numbers = #tpu.dot_dimension_numbers<[1], [0], [0], [1], [0, 0, 1, 1], [], []>} : vector<16x256xbf16>, vector<256x128xbf16>, vector<16x128xf32> -> vector<16x128xf32>
    %c0_15 = arith.constant 0 : index
    %20 = memref.load %arg1[%c0_15] : memref<1xf32, #tpu.memory_space<smem>>
    %c0_16 = arith.constant 0 : index
    %c0_17 = arith.constant 0 : index
    %21 = vector.load %arg8[%c0_16, %c0_17] : memref<1x128xf32, #tpu.memory_space<vmem>>, vector<1x128xf32>
    %22 = vector.broadcast %21 : vector<1x128xf32> to vector<16x128xf32>
    %23 = arith.addf %19, %22 : vector<16x128xf32>
    %24 = math.tanh %23 : vector<16x128xf32>
    %25 = vector.broadcast %20 : f32 to vector<16x128xf32>
    %26 = arith.mulf %25, %24 : vector<16x128xf32>
    %27 = vector.extract_strided_slice %26 {offsets = [0, 0], sizes = [16, 8], strides = [1, 1]} : vector<16x128xf32> to vector<16x8xf32>
    %c0_18 = arith.constant 0 : index
    %c0_19 = arith.constant 0 : index
    %28 = vector.load %arg9[%c0_18, %c0_19] : memref<16x8xf32, #tpu.memory_space<vmem>>, vector<16x8xf32>
    tpu.vector_store %arg9[%c0_18, %c0_19], %27 {strides = array<i32>} : memref<16x8xf32, #tpu.memory_space<vmem>>, vector<16x8xf32>,
    return
  }
  func.func @transform_0(%arg0: i32) -> i32 {
    %c0_i32 = arith.constant 0 : i32
    %c0_i32_0 = arith.constant 0 : i32
    return %c0_i32 : i32
  }
  func.func @transform_1(%arg0: i32) -> (i32, i32) {
    %c0_i32 = arith.constant 0 : i32
    %c0_i32_0 = arith.constant 0 : i32
    return %arg0, %c0_i32 : i32, i32
  }
  func.func @transform_2(%arg0: i32) -> (i32, i32) {
    %c0_i32 = arith.constant 0 : i32
    %c0_i32_0 = arith.constant 0 : i32
    %c0_i32_1 = arith.constant 0 : i32
    return %c0_i32, %c0_i32_0 : i32, i32
  }
  func.func @transform_3(%arg0: i32) -> (i32, i32) {
    %c0_i32 = arith.constant 0 : i32
    %c0_i32_0 = arith.constant 0 : i32
    %c0_i32_1 = arith.constant 0 : i32
    return %c0_i32, %c0_i32_0 : i32, i32
  }
  func.func @transform_4(%arg0: i32) -> (i32, i32) {
    %c0_i32 = arith.constant 0 : i32
    %c0_i32_0 = arith.constant 0 : i32
    %c0_i32_1 = arith.constant 0 : i32
    return %c0_i32, %c0_i32_0 : i32, i32
  }
  func.func @transform_5(%arg0: i32) -> (i32, i32) {
    %c0_i32 = arith.constant 0 : i32
    %c0_i32_0 = arith.constant 0 : i32
    %c0_i32_1 = arith.constant 0 : i32
    return %c0_i32, %c0_i32_0 : i32, i32
  }
  func.func @transform_6(%arg0: i32) -> (i32, i32) {
    %c0_i32 = arith.constant 0 : i32
    %c0_i32_0 = arith.constant 0 : i32
    %c0_i32_1 = arith.constant 0 : i32
    return %c0_i32, %c0_i32_0 : i32, i32
  }
  func.func @transform_7(%arg0: i32) -> (i32, i32) {
    %c0_i32 = arith.constant 0 : i32
    %c0_i32_0 = arith.constant 0 : i32
    %c0_i32_1 = arith.constant 0 : i32
    return %c0_i32, %c0_i32_0 : i32, i32
  }
  func.func @transform_8(%arg0: i32) -> (i32, i32) {
    %c0_i32 = arith.constant 0 : i32
    %c0_i32_0 = arith.constant 0 : i32
    return %arg0, %c0_i32 : i32, i32
  }
}

</mosaic_0001>

<llo_original>
// kernel: tpu_custom_call.1
$region0: #{tpu_custom_call.1}
  #allocation0 [shape = 'u32[]', space=smem, size = 0x4, offset = 0x4, fixed_abs, tag = 'smem constant byte address 0x4 - core index']
  #allocation1 [shape = 'u32[144,128]{1,0:T(1,128)}', space=vmem, size = 0x12000, scoped, tag = 'internal scratch']
  #allocation2 [shape = 'f32[1]{0:T(128)S(6)}', space=smem, size = 0x200, scoped, tag = 'scoped memory for tpu_custom_call.1']
  %s0 = inlined_call_operand.<no memory space> [shape: f32[1], index: 0, kind: input, shape index: {}]
  %s1 = inlined_call_operand.hbm [shape: f32[16,16], index: 1, kind: input, shape index: {}]
  %s2 = inlined_call_operand.hbm [shape: bf16[16,256], index: 2, kind: input, shape index: {}]
  %s3 = inlined_call_operand.vmem [shape: f32[1,256], index: 3, kind: input, shape index: {}]
  %s4 = inlined_call_operand.hbm [shape: bf16[256,256], index: 4, kind: input, shape index: {}]
  %s5 = inlined_call_operand.vmem [shape: f32[1,256], index: 5, kind: input, shape index: {}]
  %s6 = inlined_call_operand.hbm [shape: bf16[256,128], index: 6, kind: input, shape index: {}]
  %s7 = inlined_call_operand.vmem [shape: f32[1,128], index: 7, kind: input, shape index: {}]
  %s8 = inlined_call_operand.vmem [shape: f32[16,8], index: 8, kind: output, shape index: {}]
  %s9 = sld [smem:[#allocation0]]
  $region58: #{tpu_custom_call.1} parent=0
    _
  %s11 = ssub.s32 1, %s9
  %s12 = scalar_select 0, %s11, %s9
  %13 = sst [smem:[#allocation2]] %s0
  $region1: #{tpu_custom_call.1} parent=0
    #allocation3 [shape = 'u8[8192]{0}', space=vmem, size = 0x2000, scoped, tag = 'input window, operand 1, single buffered']
    #allocation4 [shape = 's32[1]{0}', space=sflag, size = 0x4, scoped, tag = 'scoped memory for tpu_custom_call.1']
    #allocation5 [shape = 'u8[8192]{0}', space=vmem, size = 0x2000, scoped, tag = 'input window, operand 2, single buffered']
    #allocation6 [shape = 's32[1]{0}', space=sflag, size = 0x4, scoped, tag = 'scoped memory for tpu_custom_call.1']
    #allocation7 [shape = 'u8[131072]{0}', space=vmem, size = 0x20000, scoped, tag = 'input window, operand 4, single buffered']
    #allocation8 [shape = 'u8[65536]{0}', space=vmem, size = 0x10000, scoped, tag = 'input window, operand 6, single buffered']
    #allocation9 [shape = 's32[1]{0}', space=sflag, size = 0x4, scoped, tag = 'scoped memory for tpu_custom_call.1']
    %14 = vsyncpa [#allocation4], 0
    %15 = vsyncpa [#allocation6], 0
    %16 = vsyncpa [#allocation9], 0
    // Predicated region
    $region2: #{tpu_custom_call.1} parent=1 // pred_check
      _
    $region3: #{tpu_custom_call.1} parent=1 // pred_check_branch
      %18 = sbr.rel (0) target = $region5
    $region4: #{tpu_custom_call.1} parent=1 // pred_region
      _
    $region5: #{tpu_custom_call.1} parent=1 // pred_fallthru
      _
    // Predicated region
    $region6: #{tpu_custom_call.1} parent=1 // pred_check
      _
    $region7: #{tpu_custom_call.1} parent=1 // pred_check_branch
      %20 = sbr.rel (0) target = $region9
    $region8: #{tpu_custom_call.1} parent=1 // pred_region
      %s22 = ssub.s32 256, 256
      %23 = vsyncadd [#allocation4], %s22
      %s24 = sshll.u32 [#allocation3], 4
      %s25 = int_to_ptr.vmem [resolvable:$true] %s24
      %30 = dma.hbm_to_vmem [thread:$0]  %s1, 256, %s25, [#allocation4], 128, 128, 8
    $region9: #{tpu_custom_call.1} parent=1 // pred_fallthru
      _
    // Predicated region
    $region10: #{tpu_custom_call.1} parent=1 // pred_check
      _
    $region11: #{tpu_custom_call.1} parent=1 // pred_check_branch
      %32 = sbr.rel (0) target = $region13
    $region12: #{tpu_custom_call.1} parent=1 // pred_region
      %s34 = ssub.s32 256, 256
      %35 = vsyncadd [#allocation6], %s34
      %s36 = sshll.u32 [#allocation5], 4
      %s37 = int_to_ptr.vmem [resolvable:$true] %s36
      %42 = dma.hbm_to_vmem [thread:$0]  %s2, 256, %s37, [#allocation6], 128, 128, 8
    $region13: #{tpu_custom_call.1} parent=1 // pred_fallthru
      _
    // Predicated region
    $region14: #{tpu_custom_call.1} parent=1 // pred_check
      _
    $region15: #{tpu_custom_call.1} parent=1 // pred_check_branch
      %44 = sbr.rel (0) target = $region17
    $region16: #{tpu_custom_call.1} parent=1 // pred_region
      _
    $region17: #{tpu_custom_call.1} parent=1 // pred_fallthru
      _
    // Predicated region
    $region18: #{tpu_custom_call.1} parent=1 // pred_check
      _
    $region19: #{tpu_custom_call.1} parent=1 // pred_check_branch
      %46 = sbr.rel (0) target = $region21
    $region20: #{tpu_custom_call.1} parent=1 // pred_region
      %s48 = ssub.s32 4096, 4096
      %49 = vsyncadd [#allocation6], %s48
      %s50 = sshll.u32 [#allocation7], 4
      %s51 = int_to_ptr.vmem [resolvable:$true] %s50
      %56 = dma.hbm_to_vmem [thread:$0]  %s4, 4096, %s51, [#allocation6], 128, 128, 8
    $region21: #{tpu_custom_call.1} parent=1 // pred_fallthru
      _
    // Predicated region
    $region22: #{tpu_custom_call.1} parent=1 // pred_check
      _
    $region23: #{tpu_custom_call.1} parent=1 // pred_check_branch
      %58 = sbr.rel (0) target = $region25
    $region24: #{tpu_custom_call.1} parent=1 // pred_region
      _
    $region25: #{tpu_custom_call.1} parent=1 // pred_fallthru
      _
    // Predicated region
    $region26: #{tpu_custom_call.1} parent=1 // pred_check
      _
    $region27: #{tpu_custom_call.1} parent=1 // pred_check_branch
      %60 = sbr.rel (0) target = $region29
    $region28: #{tpu_custom_call.1} parent=1 // pred_region
      %s62 = ssub.s32 2048, 2048
      %63 = vsyncadd [#allocation9], %s62
      %s64 = sshll.u32 [#allocation8], 4
      %s65 = int_to_ptr.vmem [resolvable:$true] %s64
      %70 = dma.hbm_to_vmem [thread:$0]  %s6, 2048, %s65, [#allocation9], 64, 64, 4
    $region29: #{tpu_custom_call.1} parent=1 // pred_fallthru
      _
    // Predicated region
    $region30: #{tpu_custom_call.1} parent=1 // pred_check
      _
    $region31: #{tpu_custom_call.1} parent=1 // pred_check_branch
      %72 = sbr.rel (0) target = $region33
    $region32: #{tpu_custom_call.1} parent=1 // pred_region
      _
    $region33: #{tpu_custom_call.1} parent=1 // pred_fallthru
      _
    // Predicated region
    $region34: #{tpu_custom_call.1} parent=1 // pred_check
      _
    $region35: #{tpu_custom_call.1} parent=1 // pred_check_branch
      %74 = sbr.rel (0) target = $region37
    $region36: #{tpu_custom_call.1} parent=1 // pred_region
      %75 = dma.done [#allocation4], 256
    $region37: #{tpu_custom_call.1} parent=1 // pred_fallthru
      _
    // Predicated region
    $region38: #{tpu_custom_call.1} parent=1 // pred_check
      _
    $region39: #{tpu_custom_call.1} parent=1 // pred_check_branch
      %77 = sbr.rel (0) target = $region41
    $region40: #{tpu_custom_call.1} parent=1 // pred_region
      %78 = dma.done [#allocation6], 256
    $region41: #{tpu_custom_call.1} parent=1 // pred_fallthru
      _
    // Predicated region
    $region42: #{tpu_custom_call.1} parent=1 // pred_check
      _
    $region43: #{tpu_custom_call.1} parent=1 // pred_check_branch
      %80 = sbr.rel (0) target = $region45
    $region44: #{tpu_custom_call.1} parent=1 // pred_region
      %81 = dma.done [#allocation6], 4096
    $region45: #{tpu_custom_call.1} parent=1 // pred_fallthru
      _
    // Predicated region
    $region46: #{tpu_custom_call.1} parent=1 // pred_check
      _
    $region47: #{tpu_custom_call.1} parent=1 // pred_check_branch
      %83 = sbr.rel (0) target = $region49
    $region48: #{tpu_custom_call.1} parent=1 // pred_region
      %84 = dma.done [#allocation9], 2048
    $region49: #{tpu_custom_call.1} parent=1 // pred_fallthru
      _
    %v86 = vld [vmem:[#allocation3] sm:$0xff]
    %v87 = vld [vmem:[#allocation3 + $0x8] sm:$0xff]
    %v88 = vpack.c.bf16 %v87, %v86
    %v89 = vld [vmem:[#allocation5] sm:$0xff]
    %v90 = vld [vmem:[#allocation5 + $0x8] sm:$0xff]
    %v91 = vld [vmem:[%s3] sm:$0x3]
    %v93 = vlaneseq
    %v94 = vshrl.u32 %v93, 7
    %v95 = vsub.s32 0, %v94
    %v96 = vrot.slane %v91, %v95
    %v97 = vlaneseq
    %v98 = vshrl.u32 %v97, 7
    %v99 = vsub.s32 1, %v98
    %v100 = vrot.slane %v91, %v99
    %v105 = vunpack.c.l.b16 %v89
    %v106 = vunpack.c.h.b16 %v89
    %v107 = vunpack.c.l.b16 %v90
    %v108 = vunpack.c.h.b16 %v90
    %v109 = vpack.c.b16 %v107, %v105
    %v110 = vpack.c.b16 %v108, %v106
    %vm113 = vcmask 130048
    %v115 = vsel %vm113, %v88, 0
    %117 = vmatprep.subr.bf16.mxu0 %v110
    %118 = vmatpush1.bf16.msra.mxu0 %v109
    %119 = vmatprep.subr.bf16.mxu0 0
    %120 = vmatpush1.bf16.msra.mxu0 0
    %121 = vmatprep.subr.bf16.mxu0 0
    %122 = vmatpush1.bf16.msra.mxu0 0
    %123 = vmatprep.subr.bf16.mxu0 0
    %124 = vmatpush1.bf16.msra.mxu0 0
    %125 = vmatprep.subr.bf16.mxu0 0
    %126 = vmatpush1.bf16.msra.mxu0 0
    %127 = vmatprep.subr.bf16.mxu0 0
    %128 = vmatpush1.bf16.msra.mxu0 0
    %129 = vmatprep.subr.bf16.mxu0 0
    %130 = vmatpush1.bf16.msra.mxu0 0
    %131 = vmatprep.subr.bf16.mxu0 0
    %132 = vmatpush1.bf16.msra.mxu0 0
    %133 = vmatprep.subr.bf16.mxu0 0
    %134 = vmatpush1.bf16.msra.mxu0 0
    %135 = vmatprep.subr.bf16.mxu0 0
    %136 = vmatpush1.bf16.msra.mxu0 0
    %137 = vmatprep.subr.bf16.mxu0 0
    %138 = vmatpush1.bf16.msra.mxu0 0
    %139 = vmatprep.subr.bf16.mxu0 0
    %140 = vmatpush1.bf16.msra.mxu0 0
    %141 = vmatprep.subr.bf16.mxu0 0
    %142 = vmatpush1.bf16.msra.mxu0 0
    %143 = vmatprep.subr.bf16.mxu0 0
    %144 = vmatpush1.bf16.msra.mxu0 0
    %145 = vmatprep.subr.bf16.mxu0 0
    %146 = vmatpush1.bf16.msra.mxu0 0
    %147 = vmatprep.subr.bf16.mxu0 0
    %148 = vmatpush1.bf16.msra.mxu0 0
    %149 = vmatprep.mubr.bf16.mxu0 0
    %150 = vmatmul.mubr.bf16.gmra.mrb[0].mxu0 %v115
    %v151 = vpop.f32.mrb[0].mxu0
    %v152 = vadd.f32 %v96, %v151
    %v153 = vpop.f32.mrb[0].mxu0
    %v154 = vadd.f32 %v100, %v153
    %v155 = vpop.f32.mrb[0].mxu0
    %v156 = vadd.f32 %v96, %v155
    %v157 = vpop.f32.mrb[0].mxu0
    %v158 = vadd.f32 %v100, %v157
    %159 = vdwg.mxu0
    %v160 = vmax.f32 %v152, 0.0
    %v161 = vmax.f32 %v154, 0.0
    %v162 = vmax.f32 %v156, 0.0
    %v163 = vmax.f32 %v158, 0.0
    %v164 = vpack.c.bf16 %v162, %v160
    %v165 = vpack.c.bf16 %v163, %v161
    %v166 = vld [vmem:[#allocation7] sm:$0xff]
    %v167 = vld [vmem:[#allocation7 + $0x8] sm:$0xff]
    %v168 = vld [vmem:[#allocation7 + $0x10] sm:$0xff]
    %v169 = vld [vmem:[#allocation7 + $0x18] sm:$0xff]
    %v170 = vld [vmem:[#allocation7 + $0x20] sm:$0xff]
    %v171 = vld [vmem:[#allocation7 + $0x28] sm:$0xff]
    %v172 = vld [vmem:[#allocation7 + $0x30] sm:$0xff]
    %v173 = vld [vmem:[#allocation7 + $0x38] sm:$0xff]
    %v174 = vld [vmem:[#allocation7 + $0x40] sm:$0xff]
    %v175 = vld [vmem:[#allocation7 + $0x48] sm:$0xff]
    %v176 = vld [vmem:[#allocation7 + $0x50] sm:$0xff]
    %v177 = vld [vmem:[#allocation7 + $0x58] sm:$0xff]
    %v178 = vld [vmem:[#allocation7 + $0x60] sm:$0xff]
    %v179 = vld [vmem:[#allocation7 + $0x68] sm:$0xff]
    %v180 = vld [vmem:[#allocation7 + $0x70] sm:$0xff]
    %v181 = vld [vmem:[#allocation7 + $0x78] sm:$0xff]
    %v182 = vld [vmem:[#allocation7 + $0x80] sm:$0xff]
    %v183 = vld [vmem:[#allocation7 + $0x88] sm:$0xff]
    %v184 = vld [vmem:[#allocation7 + $0x90] sm:$0xff]
    %v185 = vld [vmem:[#allocation7 + $0x98] sm:$0xff]
    %v186 = vld [vmem:[#allocation7 + $0xa0] sm:$0xff]
    %v187 = vld [vmem:[#allocation7 + $0xa8] sm:$0xff]
    %v188 = vld [vmem:[#allocation7 + $0xb0] sm:$0xff]
    %v189 = vld [vmem:[#allocation7 + $0xb8] sm:$0xff]
    %v190 = vld [vmem:[#allocation7 + $0xc0] sm:$0xff]
    %v191 = vld [vmem:[#allocation7 + $0xc8] sm:$0xff]
    %v192 = vld [vmem:[#allocation7 + $0xd0] sm:$0xff]
    %v193 = vld [vmem:[#allocation7 + $0xd8] sm:$0xff]
    %v194 = vld [vmem:[#allocation7 + $0xe0] sm:$0xff]
    %v195 = vld [vmem:[#allocation7 + $0xe8] sm:$0xff]
    %v196 = vld [vmem:[#allocation7 + $0xf0] sm:$0xff]
    %v197 = vld [vmem:[#allocation7 + $0xf8] sm:$0xff]
    %v198 = vld [vmem:[%s5] sm:$0x3]
    %v200 = vlaneseq
    %v201 = vshrl.u32 %v200, 7
    %v202 = vsub.s32 0, %v201
    %v203 = vrot.slane %v198, %v202
    %v204 = vlaneseq
    %v205 = vshrl.u32 %v204, 7
    %v206 = vsub.s32 1, %v205
    %v207 = vrot.slane %v198, %v206
    %v242 = vunpack.c.l.b16 %v166
    %v243 = vunpack.c.h.b16 %v166
    %v244 = vunpack.c.l.b16 %v167
    %v245 = vunpack.c.h.b16 %v167
    %v246 = vunpack.c.l.b16 %v168
    %v247 = vunpack.c.h.b16 %v168
    %v248 = vunpack.c.l.b16 %v169
    %v249 = vunpack.c.h.b16 %v169
    %v250 = vunpack.c.l.b16 %v170
    %v251 = vunpack.c.h.b16 %v170
    %v252 = vunpack.c.l.b16 %v171
    %v253 = vunpack.c.h.b16 %v171
    %v254 = vunpack.c.l.b16 %v172
    %v255 = vunpack.c.h.b16 %v172
    %v256 = vunpack.c.l.b16 %v173
    %v257 = vunpack.c.h.b16 %v173
    %v258 = vunpack.c.l.b16 %v174
    %v259 = vunpack.c.h.b16 %v174
    %v260 = vunpack.c.l.b16 %v175
    %v261 = vunpack.c.h.b16 %v175
    %v262 = vunpack.c.l.b16 %v176
    %v263 = vunpack.c.h.b16 %v176
    %v264 = vunpack.c.l.b16 %v177
    %v265 = vunpack.c.h.b16 %v177
    %v266 = vunpack.c.l.b16 %v178
    %v267 = vunpack.c.h.b16 %v178
    %v268 = vunpack.c.l.b16 %v179
    %v269 = vunpack.c.h.b16 %v179
    %v270 = vunpack.c.l.b16 %v180
    %v271 = vunpack.c.h.b16 %v180
    %v272 = vunpack.c.l.b16 %v181
    %v273 = vunpack.c.h.b16 %v181
    %v274 = vunpack.c.l.b16 %v182
    %v275 = vunpack.c.h.b16 %v182
    %v276 = vunpack.c.l.b16 %v183
    %v277 = vunpack.c.h.b16 %v183
    %v278 = vunpack.c.l.b16 %v184
    %v279 = vunpack.c.h.b16 %v184
    %v280 = vunpack.c.l.b16 %v185
    %v281 = vunpack.c.h.b16 %v185
    %v282 = vunpack.c.l.b16 %v186
    %v283 = vunpack.c.h.b16 %v186
    %v284 = vunpack.c.l.b16 %v187
    %v285 = vunpack.c.h.b16 %v187
    %v286 = vunpack.c.l.b16 %v188
    %v287 = vunpack.c.h.b16 %v188
    %v288 = vunpack.c.l.b16 %v189
    %v289 = vunpack.c.h.b16 %v189
    %v290 = vunpack.c.l.b16 %v190
    %v291 = vunpack.c.h.b16 %v190
    %v292 = vunpack.c.l.b16 %v191
    %v293 = vunpack.c.h.b16 %v191
    %v294 = vunpack.c.l.b16 %v192
    %v295 = vunpack.c.h.b16 %v192
    %v296 = vunpack.c.l.b16 %v193
    %v297 = vunpack.c.h.b16 %v193
    %v298 = vunpack.c.l.b16 %v194
    %v299 = vunpack.c.h.b16 %v194
    %v300 = vunpack.c.l.b16 %v195
    %v301 = vunpack.c.h.b16 %v195
    %v302 = vunpack.c.l.b16 %v196
    %v303 = vunpack.c.h.b16 %v196
    %v304 = vunpack.c.l.b16 %v197
    %v305 = vunpack.c.h.b16 %v197
    %v306 = vpack.c.b16 %v244, %v242
    %v307 = vpack.c.b16 %v245, %v243
    %v308 = vpack.c.b16 %v248, %v246
    %v309 = vpack.c.b16 %v249, %v247
    %v310 = vpack.c.b16 %v252, %v250
    %v311 = vpack.c.b16 %v253, %v251
    %v312 = vpack.c.b16 %v256, %v254
    %v313 = vpack.c.b16 %v257, %v255
    %v314 = vpack.c.b16 %v260, %v258
    %v315 = vpack.c.b16 %v261, %v259
    %v316 = vpack.c.b16 %v264, %v262
    %v317 = vpack.c.b16 %v265, %v263
    %v318 = vpack.c.b16 %v268, %v266
    %v319 = vpack.c.b16 %v269, %v267
    %v320 = vpack.c.b16 %v272, %v270
    %v321 = vpack.c.b16 %v273, %v271
    %v322 = vpack.c.b16 %v276, %v274
    %v323 = vpack.c.b16 %v277, %v275
    %v324 = vpack.c.b16 %v280, %v278
    %v325 = vpack.c.b16 %v281, %v279
    %v326 = vpack.c.b16 %v284, %v282
    %v327 = vpack.c.b16 %v285, %v283
    %v328 = vpack.c.b16 %v288, %v286
    %v329 = vpack.c.b16 %v289, %v287
    %v330 = vpack.c.b16 %v292, %v290
    %v331 = vpack.c.b16 %v293, %v291
    %v332 = vpack.c.b16 %v296, %v294
    %v333 = vpack.c.b16 %v297, %v295
    %v334 = vpack.c.b16 %v300, %v298
    %v335 = vpack.c.b16 %v301, %v299
    %v336 = vpack.c.b16 %v304, %v302
    %v337 = vpack.c.b16 %v305, %v303
    %370 = vmatprep.subr.bf16.mxu0 %v307
    %371 = vmatpush1.bf16.msra.mxu0 %v306
    %372 = vmatprep.subr.bf16.mxu0 %v309
    %373 = vmatpush1.bf16.msra.mxu0 %v308
    %374 = vmatprep.subr.bf16.mxu0 %v311
    %375 = vmatpush1.bf16.msra.mxu0 %v310
    %376 = vmatprep.subr.bf16.mxu0 %v313
    %377 = vmatpush1.bf16.msra.mxu0 %v312
    %378 = vmatprep.subr.bf16.mxu0 %v315
    %379 = vmatpush1.bf16.msra.mxu0 %v314
    %380 = vmatprep.subr.bf16.mxu0 %v317
    %381 = vmatpush1.bf16.msra.mxu0 %v316
    %382 = vmatprep.subr.bf16.mxu0 %v319
    %383 = vmatpush1.bf16.msra.mxu0 %v318
    %384 = vmatprep.subr.bf16.mxu0 %v321
    %385 = vmatpush1.bf16.msra.mxu0 %v320
    %386 = vmatprep.subr.bf16.mxu0 %v323
    %387 = vmatpush1.bf16.msra.mxu0 %v322
    %388 = vmatprep.subr.bf16.mxu0 %v325
    %389 = vmatpush1.bf16.msra.mxu0 %v324
    %390 = vmatprep.subr.bf16.mxu0 %v327
    %391 = vmatpush1.bf16.msra.mxu0 %v326
    %392 = vmatprep.subr.bf16.mxu0 %v329
    %393 = vmatpush1.bf16.msra.mxu0 %v328
    %394 = vmatprep.subr.bf16.mxu0 %v331
    %395 = vmatpush1.bf16.msra.mxu0 %v330
    %396 = vmatprep.subr.bf16.mxu0 %v333
    %397 = vmatpush1.bf16.msra.mxu0 %v332
    %398 = vmatprep.subr.bf16.mxu0 %v335
    %399 = vmatpush1.bf16.msra.mxu0 %v334
    %400 = vmatprep.subr.bf16.mxu0 %v337
    %401 = vmatpush1.bf16.msra.mxu0 %v336
    %402 = vmatprep.mubr.bf16.mxu0 %v165
    %403 = vmatmul.mubr.bf16.gmra.mrb[0].mxu0 %v164
    %v404 = vpop.f32.mrb[0].mxu0
    %v405 = vadd.f32 %v203, %v404
    %v406 = vpop.f32.mrb[0].mxu0
    %v407 = vadd.f32 %v207, %v406
    %v408 = vpop.f32.mrb[0].mxu0
    %v409 = vadd.f32 %v203, %v408
    %v410 = vpop.f32.mrb[0].mxu0
    %v411 = vadd.f32 %v207, %v410
    %412 = vdwg.mxu0
    %v413 = vmax.f32 %v405, 0.0
    %v414 = vmax.f32 %v407, 0.0
    %v415 = vmax.f32 %v409, 0.0
    %v416 = vmax.f32 %v411, 0.0
    %v417 = vpack.c.bf16 %v415, %v413
    %v418 = vpack.c.bf16 %v416, %v414
    %v419 = vld [vmem:[#allocation8] sm:$0xf]
    %v420 = vld [vmem:[#allocation8 + $0x4] sm:$0xf]
    %v421 = vld [vmem:[#allocation8 + $0x8] sm:$0xf]
    %v422 = vld [vmem:[#allocation8 + $0xc] sm:$0xf]
    %v423 = vld [vmem:[#allocation8 + $0x10] sm:$0xf]
    %v424 = vld [vmem:[#allocation8 + $0x14] sm:$0xf]
    %v425 = vld [vmem:[#allocation8 + $0x18] sm:$0xf]
    %v426 = vld [vmem:[#allocation8 + $0x1c] sm:$0xf]
    %v427 = vld [vmem:[#allocation8 + $0x20] sm:$0xf]
    %v428 = vld [vmem:[#allocation8 + $0x24] sm:$0xf]
    %v429 = vld [vmem:[#allocation8 + $0x28] sm:$0xf]
    %v430 = vld [vmem:[#allocation8 + $0x2c] sm:$0xf]
    %v431 = vld [vmem:[#allocation8 + $0x30] sm:$0xf]
    %v432 = vld [vmem:[#allocation8 + $0x34] sm:$0xf]
    %v433 = vld [vmem:[#allocation8 + $0x38] sm:$0xf]
    %v434 = vld [vmem:[#allocation8 + $0x3c] sm:$0xf]
    %v435 = vld [vmem:[#allocation8 + $0x40] sm:$0xf]
    %v436 = vld [vmem:[#allocation8 + $0x44] sm:$0xf]
    %v437 = vld [vmem:[#allocation8 + $0x48] sm:$0xf]
    %v438 = vld [vmem:[#allocation8 + $0x4c] sm:$0xf]
    %v439 = vld [vmem:[#allocation8 + $0x50] sm:$0xf]
    %v440 = vld [vmem:[#allocation8 + $0x54] sm:$0xf]
    %v441 = vld [vmem:[#allocation8 + $0x58] sm:$0xf]
    %v442 = vld [vmem:[#allocation8 + $0x5c] sm:$0xf]
    %v443 = vld [vmem:[#allocation8 + $0x60] sm:$0xf]
    %v444 = vld [vmem:[#allocation8 + $0x64] sm:$0xf]
    %v445 = vld [vmem:[#allocation8 + $0x68] sm:$0xf]
    %v446 = vld [vmem:[#allocation8 + $0x6c] sm:$0xf]
    %v447 = vld [vmem:[#allocation8 + $0x70] sm:$0xf]
    %v448 = vld [vmem:[#allocation8 + $0x74] sm:$0xf]
    %v449 = vld [vmem:[#allocation8 + $0x78] sm:$0xf]
    %v450 = vld [vmem:[#allocation8 + $0x7c] sm:$0xf]
    %s451 = sld [smem:[#allocation2]]
    %v452 = vld [vmem:[%s7] sm:$0x1]
    %v454 = vlaneseq
    %v455 = vshrl.u32 %v454, 7
    %v456 = vsub.s32 0, %v455
    %v457 = vrot.slane %v452, %v456
    %v491 = vunpack.c.l.b16 %v419
    %v492 = vunpack.c.l.b16 %v420
    %v493 = vunpack.c.l.b16 %v421
    %v494 = vunpack.c.l.b16 %v422
    %v495 = vunpack.c.l.b16 %v423
    %v496 = vunpack.c.l.b16 %v424
    %v497 = vunpack.c.l.b16 %v425
    %v498 = vunpack.c.l.b16 %v426
    %v499 = vunpack.c.l.b16 %v427
    %v500 = vunpack.c.l.b16 %v428
    %v501 = vunpack.c.l.b16 %v429
    %v502 = vunpack.c.l.b16 %v430
    %v503 = vunpack.c.l.b16 %v431
    %v504 = vunpack.c.l.b16 %v432
    %v505 = vunpack.c.l.b16 %v433
    %v506 = vunpack.c.l.b16 %v434
    %v507 = vunpack.c.l.b16 %v435
    %v508 = vunpack.c.l.b16 %v436
    %v509 = vunpack.c.l.b16 %v437
    %v510 = vunpack.c.l.b16 %v438
    %v511 = vunpack.c.l.b16 %v439
    %v512 = vunpack.c.l.b16 %v440
    %v513 = vunpack.c.l.b16 %v441
    %v514 = vunpack.c.l.b16 %v442
    %v515 = vunpack.c.l.b16 %v443
    %v516 = vunpack.c.l.b16 %v444
    %v517 = vunpack.c.l.b16 %v445
    %v518 = vunpack.c.l.b16 %v446
    %v519 = vunpack.c.l.b16 %v447
    %v520 = vunpack.c.l.b16 %v448
    %v521 = vunpack.c.l.b16 %v449
    %v522 = vunpack.c.l.b16 %v450
    %v523 = vpack.c.b16 %v492, %v491
    %v524 = vpack.c.b16 %v494, %v493
    %v525 = vpack.c.b16 %v496, %v495
    %v526 = vpack.c.b16 %v498, %v497
    %v527 = vpack.c.b16 %v500, %v499
    %v528 = vpack.c.b16 %v502, %v501
    %v529 = vpack.c.b16 %v504, %v503
    %v530 = vpack.c.b16 %v506, %v505
    %v531 = vpack.c.b16 %v508, %v507
    %v532 = vpack.c.b16 %v510, %v509
    %v533 = vpack.c.b16 %v512, %v511
    %v534 = vpack.c.b16 %v514, %v513
    %v535 = vpack.c.b16 %v516, %v515
    %v536 = vpack.c.b16 %v518, %v517
    %v537 = vpack.c.b16 %v520, %v519
    %v538 = vpack.c.b16 %v522, %v521
    %555 = vmatprep.subr.bf16.mxu0 0
    %556 = vmatpush1.bf16.msra.mxu0 %v523
    %557 = vmatprep.subr.bf16.mxu0 0
    %558 = vmatpush1.bf16.msra.mxu0 %v524
    %559 = vmatprep.subr.bf16.mxu0 0
    %560 = vmatpush1.bf16.msra.mxu0 %v525
    %561 = vmatprep.subr.bf16.mxu0 0
    %562 = vmatpush1.bf16.msra.mxu0 %v526
    %563 = vmatprep.subr.bf16.mxu0 0
    %564 = vmatpush1.bf16.msra.mxu0 %v527
    %565 = vmatprep.subr.bf16.mxu0 0
    %566 = vmatpush1.bf16.msra.mxu0 %v528
    %567 = vmatprep.subr.bf16.mxu0 0
    %568 = vmatpush1.bf16.msra.mxu0 %v529
    %569 = vmatprep.subr.bf16.mxu0 0
    %570 = vmatpush1.bf16.msra.mxu0 %v530
    %571 = vmatprep.subr.bf16.mxu0 0
    %572 = vmatpush1.bf16.msra.mxu0 %v531
    %573 = vmatprep.subr.bf16.mxu0 0
    %574 = vmatpush1.bf16.msra.mxu0 %v532
    %575 = vmatprep.subr.bf16.mxu0 0
    %576 = vmatpush1.bf16.msra.mxu0 %v533
    %577 = vmatprep.subr.bf16.mxu0 0
    %578 = vmatpush1.bf16.msra.mxu0 %v534
    %579 = vmatprep.subr.bf16.mxu0 0
    %580 = vmatpush1.bf16.msra.mxu0 %v535
    %581 = vmatprep.subr.bf16.mxu0 0
    %582 = vmatpush1.bf16.msra.mxu0 %v536
    %583 = vmatprep.subr.bf16.mxu0 0
    %584 = vmatpush1.bf16.msra.mxu0 %v537
    %585 = vmatprep.subr.bf16.mxu0 0
    %586 = vmatpush1.bf16.msra.mxu0 %v538
    %587 = vmatprep.mubr.bf16.mxu0 %v418
    %588 = vmatmul.mubr.bf16.gmra.mrb[0].mxu0 %v417
    %v589 = vpop.f32.mrb[0].mxu0
    %v590 = vadd.f32 %v457, %v589
    %v591 = vpop.f32.mrb[0].mxu0
    %v592 = vpop.f32.mrb[0].mxu0
    %v593 = vadd.f32 %v457, %v592
    %v594 = vpop.f32.mrb[0].mxu0
    %595 = vdwg.mxu0
    %v596 = vtanh.pop %v590
    %v597 = vtanh.pop %v593
    %v598 = vstv %s451
    %v599 = vmul.f32 %v598, %v596
    %v600 = vmul.f32 %v598, %v597
    %vm601 = vcmask 64512
    %602 = vst.msk [vmem:[%s8] sm:$0xff] %vm601, %v599
    %603 = vst.msk [vmem:[%s8 + $0x8] sm:$0xff] %vm601, %v600
    // Predicated region
    $region50: #{tpu_custom_call.1} parent=1 // pred_check
      _
    $region51: #{tpu_custom_call.1} parent=1 // pred_check_branch
      %605 = sbr.rel (0) target = $region53
    $region52: #{tpu_custom_call.1} parent=1 // pred_region
      _
    $region53: #{tpu_custom_call.1} parent=1 // pred_fallthru
      _
    // Predicated region
    $region54: #{tpu_custom_call.1} parent=1 // pred_check
      _
    $region55: #{tpu_custom_call.1} parent=1 // pred_check_branch
      %607 = sbr.rel (0) target = $region57
    $region56: #{tpu_custom_call.1} parent=1 // pred_region
      _
    $region57: #{tpu_custom_call.1} parent=1 // pred_fallthru
      _
    %608 = vsyncpa [#allocation4], 1
    %609 = vsyncpa [#allocation6], 1
    %610 = vsyncpa [#allocation9], 1

</llo_original>
